<compile_context>
chip_gen: v5e
topology: v5e:2x2
jax: 0.10.0
libtpu: 0.0.40
codegen_flags: <defaults>
</compile_context>

<pallas_src>
import math

import jax
import jax.numpy as jnp
from jax.experimental import pallas as pl
from jax.experimental.pallas import tpu as pltpu


# Model constants (synthetic stand-ins for BioViL / CXR-BERT shapes).
E = 128        # projected embedding dim (cls_projection_head / image projector out)
HIDDEN = 32    # synthetic "BERT" hidden size
VOCAB = 64
C = 4          # synthetic CNN feature channels
HP = WP = 4    # synthetic patch grid -> P = 16 patches per image
P = HP * WP
KPAD = 128     # lane-padded contraction dim of the packed projection matmul


# ----------------------------------------------------------------------------
# Fused Pallas kernel
# ----------------------------------------------------------------------------

def _build_fused_kernel(nt, g):
    """Two MXU passes + one normalisation pass; one lane-dense output slab.

    Input slab rows (nt + 128 total):
        [0, nt)            word-token features        (text columns + text bias)
        [nt, nt+g)         global rows: L*N image-global means, N CLS dups, pad
        [nt+g, nt+g+LNP)   patch features             (image columns + image bias)
        rest               zero padding (projects + normalises to 0)

    Output slab (nt + g, 128):
        rows [0, nt)   x cols [g, g+LNP)  -> normalized word . patch cross-sims
        rows [nt,nt+g) x cols [0, g)      -> exp(scale) * [img;txt] global gram
    """

    def kernel(x_ref, w_ref, scale_ref, out_ref):
        eps = 1e-12
        scale = scale_ref[0]                            # exp(logit_scale), SMEM scalar

        # --- MXU pass 1: every projection (biases folded into w) ------------
        proj = jnp.dot(x_ref[...], w_ref[...],
                       preferred_element_type=jnp.float32)   # (nt+128, E)

        # --- one L2 normalisation pass over every row (XLU reduce + EUP) ----
        proj_n = proj * jax.lax.rsqrt(
            jnp.sum(proj * proj, axis=-1, keepdims=True) + eps)

        # --- MXU pass 2: cross-weights + similarity grams in one shot -------
        # lhs rows: word rows then global rows (contiguous, 8-aligned slices).
        # rhs rows: global rows, patch rows, zero pad -> exactly 128 columns,
        # so the result and its store are fully lane-dense.
        lhs = proj_n[0:nt + g]                          # (nt+g, E)
        rhs = proj_n[nt:nt + KPAD]                      # (128, E)
        res = jax.lax.dot_general(lhs, rhs, (((1,), (1,)), ((), ())),
                                  preferred_element_type=jnp.float32)

        # Scale only the gram rows (global-embedding rows); cross rows stay
        # unscaled.  One broadcast select + multiply on the VPU.
        row = jax.lax.broadcasted_iota(jnp.int32, (nt + g, 1), 0)
        out_ref[...] = res * jnp.where(row >= nt, scale, jnp.float32(1.0))

    return kernel


def medclip_fused(x_packed, w_packed, exp_scale, *, nt, g):
    """One pallas_call -> one lane-dense (nt+g, 128) result slab."""
    assert x_packed.shape == (nt + KPAD, KPAD)
    assert w_packed.shape == (KPAD, E)
    m_out = nt + g
    kernel = _build_fused_kernel(nt, g)

    flops = 2 * (nt + KPAD) * KPAD * E + 2 * m_out * KPAD * E
    bytes_accessed = 4 * (x_packed.size + w_packed.size + m_out * E) + 4

    return pl.pallas_call(
        kernel,
        out_shape=jax.ShapeDtypeStruct((m_out, E), jnp.float32),
        in_specs=[pl.BlockSpec(memory_space=pltpu.MemorySpace.VMEM),
                  pl.BlockSpec(memory_space=pltpu.MemorySpace.VMEM),
                  pl.BlockSpec(memory_space=pltpu.MemorySpace.SMEM)],
        out_specs=pl.BlockSpec(memory_space=pltpu.MemorySpace.VMEM),
        cost_estimate=pl.CostEstimate(flops=flops,
                                      transcendentals=nt + KPAD,
                                      bytes_accessed=bytes_accessed),
    )(x_packed, w_packed, exp_scale)


# ----------------------------------------------------------------------------
# MedCLIP forward (synthetic-encoder glue in plain JAX, compute in Pallas)
# ----------------------------------------------------------------------------

def medclip_forward(params, images, token_ids):
    if not isinstance(images, list):
        images = [images]
    images = [im[None, :] if im.ndim == 3 else im for im in images]
    L = len(images)
    N, T = token_ids.shape
    NT = N * T
    LN = L * N
    LNP = LN * P
    G = max(8, ((LN + N + 7) // 8) * 8)          # globals band, 8-aligned
    assert G + LNP <= KPAD and NT % 8 == 0, "toy-shape packing limits exceeded"

    # TODO(synk): HuggingFace tokenizer + pretrained CXR-BERT encoder are not
    # reproducible in a Pallas kernel; last_hidden_state is a deterministic
    # token-table lookup.  The cls_projection_head runs inside the fused kernel.
    tok_emb = params["tok_table"][token_ids]                    # (N, T, HIDDEN)
    text_x = tok_emb.reshape(NT, HIDDEN)

    # TODO(synk): pretrained BioViL ResNet encoder is replaced by average-pool
    # patchification; the projector and everything downstream run inside the
    # fused Pallas kernel.  Patch ordering matches the module's
    # (N, E, Hp, Wp) -> (N, E, Hp*Wp) flattening.
    feats = []
    for im in images:                                           # NCHW
        n, c, h, w = im.shape
        pooled = im.reshape(n, c, HP, h // HP, WP, w // WP).mean(axis=(3, 5))
        feats.append(pooled.transpose(0, 2, 3, 1).reshape(n * P, c))
    img_x = jnp.concatenate(feats, axis=0)                      # (LNP, C)

    # --- pack ONE lane-dense input slab (layout plumbing only) --------------
    # cols: [0:H)=text feats, [H:H+C)=image feats, H+C=text-bias, H+C+1=img-bias
    f32 = jnp.float32
    x = jnp.zeros((NT + KPAD, KPAD), f32)
    # word-token rows
    x = x.at[0:NT, 0:HIDDEN].set(text_x)
    x = x.at[0:NT, HIDDEN + C].set(1.0)
    # image-global rows (global-avg-pool feats; projection commutes with mean)
    img_glob = img_x.reshape(LN, P, C).mean(axis=1)
    x = x.at[NT:NT + LN, HIDDEN:HIDDEN + C].set(img_glob)
    x = x.at[NT:NT + LN, HIDDEN + C + 1].set(1.0)
    # text-global rows (CLS token duplicates)
    cls_x = text_x.reshape(N, T, HIDDEN)[:, 0, :]
    x = x.at[NT + LN:NT + LN + N, 0:HIDDEN].set(cls_x)
    x = x.at[NT + LN:NT + LN + N, HIDDEN + C].set(1.0)
    # patch rows
    x = x.at[NT + G:NT + G + LNP, HIDDEN:HIDDEN + C].set(img_x)
    x = x.at[NT + G:NT + G + LNP, HIDDEN + C + 1].set(1.0)
    # remaining rows stay zero (project + normalise to zero rows)

    # block-diagonal weight with both biases folded in as extra rows
    wmat = jnp.zeros((KPAD, E), f32)
    wmat = wmat.at[0:HIDDEN].set(params["proj_w"])
    wmat = wmat.at[HIDDEN:HIDDEN + C].set(params["cnn_w"])
    wmat = wmat.at[HIDDEN + C].set(params["proj_b"])
    wmat = wmat.at[HIDDEN + C + 1].set(params["cnn_b"])

    # exp(logit_scale) precomputed once outside the kernel (SMEM scalar input).
    exp_scale = jnp.exp(params["logit_scale"]).reshape(1)

    slab = medclip_fused(x, wmat, exp_scale, nt=NT, g=G)        # (NT+G, 128)

    # --- unpack (wrapper-side slices / reshapes only) ------------------------
    cross_big = slab[0:NT, G:G + LNP]                 # (NT, LNP): all word x patch
    gram = slab[NT:NT + G, 0:G]                       # scaled [img; txt] global gram
    ii = gram[0:LN, 0:LN]                             # image x image
    it = gram[0:LN, LN:LN + N]                        # image x text

    cb = cross_big.reshape(N, T, LN, P)
    cross_weights = []
    for l in range(L):
        per_l = jnp.stack([cb[n, :, l * N + n, :] for n in range(N)], axis=0)
        cross_weights.append(per_l)                   # (N, T, P)

    imtext_logits = [it[l * N:(l + 1) * N, :] for l in range(L)]

    imim_logits = None
    if L > 1:
        imim_logits = []
        for i in range(L):
            for j in range(L):
                if i <= j:
                    continue
                imim_logits.append(ii[i * N:(i + 1) * N, j * N:(j + 1) * N])

    return imtext_logits, cross_weights, imim_logits


# ----------------------------------------------------------------------------
# Deterministic parameter init + example run
# ----------------------------------------------------------------------------

def init_params(key):
    k1, k2, k3, k4, k5 = jax.random.split(key, 5)
    return {
        "tok_table": 0.02 * jax.random.normal(k1, (VOCAB, HIDDEN), jnp.float32),
        "proj_w": 0.02 * jax.random.normal(k2, (HIDDEN, E), jnp.float32),
        "proj_b": 0.02 * jax.random.normal(k3, (E,), jnp.float32),
        "cnn_w": 0.02 * jax.random.normal(k4, (C, E), jnp.float32),
        "cnn_b": 0.02 * jax.random.normal(k5, (E,), jnp.float32),
        "logit_scale": jnp.asarray(math.log(1.0 / 0.07), jnp.float32),
    }


if __name__ == "__main__":
    key = jax.random.PRNGKey(0)
    kp, kt, ki1, ki2 = jax.random.split(key, 4)

    N, H, W = 2, 16, 16            # image batch / spatial
    T = 8                          # text sequence length

    params = init_params(kp)
    token_ids = jax.random.randint(kt, (N, T), 0, VOCAB)
    images = [
        jax.random.normal(ki1, (N, C, H, W), jnp.float32),
        jax.random.normal(ki2, (N, C, H, W), jnp.float32),
    ]

    forward = jax.jit(medclip_forward)
    imtext_logits, cross_weights, imim_logits = forward(params, images, token_ids)
    jax.block_until_ready((imtext_logits, cross_weights, imim_logits))

    # basic shape sanity
    assert len(imtext_logits) == len(images)
    assert imtext_logits[0].shape == (N, N)
    assert cross_weights[0].shape == (N, T, HP * WP)
    assert imim_logits[0].shape == (N, N)

    print("KERNEL_OK")
</pallas_src>

<mosaic_0001>
module attributes {stable_mosaic.version = 11 : i64} {
  func.func @kernel(%arg0: memref<144x128xf32, #tpu.memory_space<vmem>>, %arg1: memref<128x128xf32, #tpu.memory_space<vmem>>, %arg2: memref<1xf32, #tpu.memory_space<smem>>, %arg3: memref<24x128xf32, #tpu.memory_space<vmem>>) attributes {dimension_semantics = [], scalar_prefetch = 0 : i64, scratch_operands = 0 : i64, tpu.core_type = #tpu.core_type<tc>} {
    %c0 = arith.constant 0 : index
    %0 = memref.load %arg2[%c0] : memref<1xf32, #tpu.memory_space<smem>>
    %c0_0 = arith.constant 0 : index
    %c0_1 = arith.constant 0 : index
    %1 = vector.load %arg0[%c0_0, %c0_1] : memref<144x128xf32, #tpu.memory_space<vmem>>, vector<144x128xf32>
    %c0_2 = arith.constant 0 : index
    %c0_3 = arith.constant 0 : index
    %2 = vector.load %arg1[%c0_2, %c0_3] : memref<128x128xf32, #tpu.memory_space<vmem>>, vector<128x128xf32>
    %cst = arith.constant dense<0.000000e+00> : vector<144x128xf32>
    %3 = tpu.matmul %1, %2, %cst {dimension_numbers = #tpu.dot_dimension_numbers<[1], [0], [0], [1], [0, 0, 1, 1], [], []>} : vector<144x128xf32>, vector<128x128xf32>, vector<144x128xf32> -> vector<144x128xf32>
    %4 = arith.mulf %3, %3 : vector<144x128xf32>
    %cst_4 = arith.constant dense<0.000000e+00> : vector<144xf32>
    %5 = vector.multi_reduction <add>, %4, %cst_4 [1] : vector<144x128xf32> to vector<144xf32>
    %6 = vector.shape_cast %5 : vector<144xf32> to vector<144x1xf32>
    %cst_5 = arith.constant 9.99999996E-13 : f32
    %7 = vector.broadcast %cst_5 : f32 to vector<144x1xf32>
    %8 = arith.addf %6, %7 : vector<144x1xf32>
    %9 = math.rsqrt %8 : vector<144x1xf32>
    %10 = vector.broadcast %9 : vector<144x1xf32> to vector<144x128xf32>
    %11 = arith.mulf %3, %10 : vector<144x128xf32>
    %12 = vector.extract_strided_slice %11 {offsets = [0, 0], sizes = [24, 128], strides = [1, 1]} : vector<144x128xf32> to vector<24x128xf32>
    %13 = vector.extract_strided_slice %11 {offsets = [16, 0], sizes = [128, 128], strides = [1, 1]} : vector<144x128xf32> to vector<128x128xf32>
    %cst_6 = arith.constant dense<0.000000e+00> : vector<24x128xf32>
    %14 = tpu.matmul %12, %13, %cst_6 {dimension_numbers = #tpu.dot_dimension_numbers<[1], [1], [0], [0], [0, 0, 1, 0], [], []>} : vector<24x128xf32>, vector<128x128xf32>, vector<24x128xf32> -> vector<24x128xf32>
    %15 = tpu.iota {dimensions = array<i32: 0>} : vector<24x1xi32>
    %c16_i32 = arith.constant 16 : i32
    %16 = vector.broadcast %c16_i32 : i32 to vector<24x1xi32>
    %17 = arith.cmpi sge, %15, %16 : vector<24x1xi32>
    %cst_7 = arith.constant 1.000000e+00 : f32
    %18 = vector.broadcast %0 : f32 to vector<24x1xf32>
    %19 = vector.broadcast %cst_7 : f32 to vector<24x1xf32>
    %20 = arith.select %17, %18, %19 : vector<24x1xi1>, vector<24x1xf32>
    %21 = vector.broadcast %20 : vector<24x1xf32> to vector<24x128xf32>
    %22 = arith.mulf %14, %21 : vector<24x128xf32>
    %c0_8 = arith.constant 0 : index
    %c0_9 = arith.constant 0 : index
    %23 = vector.load %arg3[%c0_8, %c0_9] : memref<24x128xf32, #tpu.memory_space<vmem>>, vector<24x128xf32>
    tpu.vector_store %arg3[%c0_8, %c0_9], %22 {strides = array<i32>} : memref<24x128xf32, #tpu.memory_space<vmem>>, vector<24x128xf32>,
    return
  }
}

</mosaic_0001>

<llo_original>
// kernel: medclip_forward.1
$region0: #{medclip_forward.1}
  #allocation0 [shape = 'u32[]', space=smem, size = 0x4, offset = 0x4, fixed_abs, tag = 'smem constant byte address 0x4 - core index']
  #allocation1 [shape = 'u32[72,128]{1,0:T(1,128)}', space=vmem, size = 0x9000, scoped, tag = 'internal scratch']
  #allocation2 [shape = 'f32[1]{0:T(128)S(6)}', space=smem, size = 0x200, scoped, tag = 'scoped memory for medclip_forward.1']
  %s0 = inlined_call_operand.vmem [shape: f32[144,128], index: 0, kind: input, shape index: {}]
  %s1 = inlined_call_operand.vmem [shape: f32[128,128], index: 1, kind: input, shape index: {}]
  %s2 = inlined_call_operand.<no memory space> [shape: f32[1], index: 2, kind: input, shape index: {}]
  %s3 = inlined_call_operand.vmem [shape: f32[24,128], index: 3, kind: output, shape index: {}]
  %s4 = sld [smem:[#allocation0]]
  $region22: #{medclip_forward.1} parent=0
    _
  %s6 = ssub.s32 1, %s4
  %s7 = scalar_select 0, %s6, %s4
  %8 = sst [smem:[#allocation2]] %s2
  // Predicated region
  $region2: #{medclip_forward.1} parent=0 // pred_check
    _
  $region3: #{medclip_forward.1} parent=0 // pred_check_branch
    %10 = sbr.rel (0) target = $region5
  $region4: #{medclip_forward.1} parent=0 // pred_region
    _
  $region5: #{medclip_forward.1} parent=0 // pred_fallthru
    _
  // Predicated region
  $region6: #{medclip_forward.1} parent=0 // pred_check
    _
  $region7: #{medclip_forward.1} parent=0 // pred_check_branch
    %12 = sbr.rel (0) target = $region9
  $region8: #{medclip_forward.1} parent=0 // pred_region
    _
  $region9: #{medclip_forward.1} parent=0 // pred_fallthru
    _
  // Predicated region
  $region10: #{medclip_forward.1} parent=0 // pred_check
    _
  $region11: #{medclip_forward.1} parent=0 // pred_check_branch
    %14 = sbr.rel (0) target = $region13
  $region12: #{medclip_forward.1} parent=0 // pred_region
    _
  $region13: #{medclip_forward.1} parent=0 // pred_fallthru
    _
  %s15 = sld [smem:[#allocation2]]
  %v16 = vld [vmem:[%s0] sm:$0xff]
  %v17 = vld [vmem:[%s0 + $0x8] sm:$0xff]
  %v18 = vld [vmem:[%s0 + $0x10] sm:$0xff]
  %v19 = vld [vmem:[%s0 + $0x18] sm:$0xff]
  %v20 = vld [vmem:[%s0 + $0x20] sm:$0xff]
  %v21 = vld [vmem:[%s0 + $0x28] sm:$0xff]
  %v22 = vld [vmem:[%s0 + $0x30] sm:$0xff]
  %v23 = vld [vmem:[%s0 + $0x38] sm:$0xff]
  %v24 = vld [vmem:[%s0 + $0x40] sm:$0xff]
  %v25 = vld [vmem:[%s0 + $0x48] sm:$0xff]
  %v26 = vld [vmem:[%s0 + $0x50] sm:$0xff]
  %v27 = vld [vmem:[%s0 + $0x58] sm:$0xff]
  %v28 = vld [vmem:[%s0 + $0x60] sm:$0xff]
  %v29 = vld [vmem:[%s0 + $0x68] sm:$0xff]
  %v30 = vld [vmem:[%s0 + $0x70] sm:$0xff]
  %v31 = vld [vmem:[%s0 + $0x78] sm:$0xff]
  %v32 = vld [vmem:[%s0 + $0x80] sm:$0xff]
  %v33 = vld [vmem:[%s0 + $0x88] sm:$0xff]
  %v34 = vld [vmem:[%s1] sm:$0xff]
  %v35 = vld [vmem:[%s1 + $0x8] sm:$0xff]
  %v36 = vld [vmem:[%s1 + $0x10] sm:$0xff]
  %v37 = vld [vmem:[%s1 + $0x18] sm:$0xff]
  %v38 = vld [vmem:[%s1 + $0x20] sm:$0xff]
  %v39 = vld [vmem:[%s1 + $0x28] sm:$0xff]
  %v40 = vld [vmem:[%s1 + $0x30] sm:$0xff]
  %v41 = vld [vmem:[%s1 + $0x38] sm:$0xff]
  %v42 = vld [vmem:[%s1 + $0x40] sm:$0xff]
  %v43 = vld [vmem:[%s1 + $0x48] sm:$0xff]
  %v44 = vld [vmem:[%s1 + $0x50] sm:$0xff]
  %v45 = vld [vmem:[%s1 + $0x58] sm:$0xff]
  %v46 = vld [vmem:[%s1 + $0x60] sm:$0xff]
  %v47 = vld [vmem:[%s1 + $0x68] sm:$0xff]
  %v48 = vld [vmem:[%s1 + $0x70] sm:$0xff]
  %v49 = vld [vmem:[%s1 + $0x78] sm:$0xff]
  %50 = vmatpush.msra.mxu0 %v49
  %51 = vmatpush.msra.mxu0 %v48
  %52 = vmatpush.msra.mxu0 %v47
  %53 = vmatpush.msra.mxu0 %v46
  %54 = vmatpush.msra.mxu0 %v45
  %55 = vmatpush.msra.mxu0 %v44
  %56 = vmatpush.msra.mxu0 %v43
  %57 = vmatpush.msra.mxu0 %v42
  %58 = vmatpush.msra.mxu0 %v41
  %59 = vmatpush.msra.mxu0 %v40
  %60 = vmatpush.msra.mxu0 %v39
  %61 = vmatpush.msra.mxu0 %v38
  %62 = vmatpush.msra.mxu0 %v37
  %63 = vmatpush.msra.mxu0 %v36
  %64 = vmatpush.msra.mxu0 %v35
  %65 = vmatpush.msra.mxu0 %v34
  %66 = vmatmul.f32.gmra.mxu0 %v16
  %v67 = vpop.f32.mrf.mxu0
  %v68 = vadd.f32 0.0, %v67
  %69 = vmatmul.f32.gmra.mxu0 %v17
  %v70 = vpop.f32.mrf.mxu0
  %v71 = vadd.f32 0.0, %v70
  %72 = vmatmul.f32.gmra.mxu0 %v18
  %v73 = vpop.f32.mrf.mxu0
  %v74 = vadd.f32 0.0, %v73
  %75 = vmatmul.f32.gmra.mxu0 %v19
  %v76 = vpop.f32.mrf.mxu0
  %v77 = vadd.f32 0.0, %v76
  %78 = vmatmul.f32.gmra.mxu0 %v20
  %v79 = vpop.f32.mrf.mxu0
  %v80 = vadd.f32 0.0, %v79
  %81 = vmatmul.f32.gmra.mxu0 %v21
  %v82 = vpop.f32.mrf.mxu0
  %v83 = vadd.f32 0.0, %v82
  %84 = vmatmul.f32.gmra.mxu0 %v22
  %v85 = vpop.f32.mrf.mxu0
  %v86 = vadd.f32 0.0, %v85
  %87 = vmatmul.f32.gmra.mxu0 %v23
  %v88 = vpop.f32.mrf.mxu0
  %v89 = vadd.f32 0.0, %v88
  %90 = vmatmul.f32.gmra.mxu0 %v24
  %v91 = vpop.f32.mrf.mxu0
  %v92 = vadd.f32 0.0, %v91
  %93 = vmatmul.f32.gmra.mxu0 %v25
  %v94 = vpop.f32.mrf.mxu0
  %v95 = vadd.f32 0.0, %v94
  %96 = vmatmul.f32.gmra.mxu0 %v26
  %v97 = vpop.f32.mrf.mxu0
  %v98 = vadd.f32 0.0, %v97
  %99 = vmatmul.f32.gmra.mxu0 %v27
  %v100 = vpop.f32.mrf.mxu0
  %v101 = vadd.f32 0.0, %v100
  %102 = vmatmul.f32.gmra.mxu0 %v28
  %v103 = vpop.f32.mrf.mxu0
  %v104 = vadd.f32 0.0, %v103
  %105 = vmatmul.f32.gmra.mxu0 %v29
  %v106 = vpop.f32.mrf.mxu0
  %v107 = vadd.f32 0.0, %v106
  %108 = vmatmul.f32.gmra.mxu0 %v30
  %v109 = vpop.f32.mrf.mxu0
  %v110 = vadd.f32 0.0, %v109
  %111 = vmatmul.f32.gmra.mxu0 %v31
  %v112 = vpop.f32.mrf.mxu0
  %v113 = vadd.f32 0.0, %v112
  %114 = vmatmul.f32.gmra.mxu0 %v32
  %v115 = vpop.f32.mrf.mxu0
  %v116 = vadd.f32 0.0, %v115
  %117 = vmatmul.f32.gmra.mxu0 %v33
  %v118 = vpop.f32.mrf.mxu0
  %v119 = vadd.f32 0.0, %v118
  %120 = vdwg.mxu0
  %v121 = vmul.f32 %v68, %v68
  %v122 = vmul.f32 %v71, %v71
  %v123 = vmul.f32 %v74, %v74
  %v124 = vmul.f32 %v77, %v77
  %v125 = vmul.f32 %v80, %v80
  %v126 = vmul.f32 %v83, %v83
  %v127 = vmul.f32 %v86, %v86
  %v128 = vmul.f32 %v89, %v89
  %v129 = vmul.f32 %v92, %v92
  %v130 = vmul.f32 %v95, %v95
  %v131 = vmul.f32 %v98, %v98
  %v132 = vmul.f32 %v101, %v101
  %v133 = vmul.f32 %v104, %v104
  %v134 = vmul.f32 %v107, %v107
  %v135 = vmul.f32 %v110, %v110
  %v136 = vmul.f32 %v113, %v113
  %v137 = vmul.f32 %v116, %v116
  %v138 = vmul.f32 %v119, %v119
  %139 = vadd.xlane.f32.xlu0 %v121
  %v140 = vpop.xlane.xlu0 %139
  %141 = vadd.xlane.f32.xlu0 %v122
  %v142 = vpop.xlane.xlu0 %141
  %143 = vadd.xlane.f32.xlu0 %v123
  %v144 = vpop.xlane.xlu0 %143
  %145 = vadd.xlane.f32.xlu0 %v124
  %v146 = vpop.xlane.xlu0 %145
  %147 = vadd.xlane.f32.xlu0 %v125
  %v148 = vpop.xlane.xlu0 %147
  %149 = vadd.xlane.f32.xlu0 %v126
  %v150 = vpop.xlane.xlu0 %149
  %151 = vadd.xlane.f32.xlu0 %v127
  %v152 = vpop.xlane.xlu0 %151
  %153 = vadd.xlane.f32.xlu0 %v128
  %v154 = vpop.xlane.xlu0 %153
  %155 = vadd.xlane.f32.xlu0 %v129
  %v156 = vpop.xlane.xlu0 %155
  %157 = vadd.xlane.f32.xlu0 %v130
  %v158 = vpop.xlane.xlu0 %157
  %159 = vadd.xlane.f32.xlu0 %v131
  %v160 = vpop.xlane.xlu0 %159
  %161 = vadd.xlane.f32.xlu0 %v132
  %v162 = vpop.xlane.xlu0 %161
  %163 = vadd.xlane.f32.xlu0 %v133
  %v164 = vpop.xlane.xlu0 %163
  %165 = vadd.xlane.f32.xlu0 %v134
  %v166 = vpop.xlane.xlu0 %165
  %167 = vadd.xlane.f32.xlu0 %v135
  %v168 = vpop.xlane.xlu0 %167
  %169 = vadd.xlane.f32.xlu0 %v136
  %v170 = vpop.xlane.xlu0 %169
  %171 = vadd.xlane.f32.xlu0 %v137
  %v172 = vpop.xlane.xlu0 %171
  %173 = vadd.xlane.f32.xlu0 %v138
  %v174 = vpop.xlane.xlu0 %173
  %v175 = vadd.f32 %v140, 1e-12
  %v176 = vadd.f32 %v142, 1e-12
  %v177 = vadd.f32 %v144, 1e-12
  %v178 = vadd.f32 %v146, 1e-12
  %v179 = vadd.f32 %v148, 1e-12
  %v180 = vadd.f32 %v150, 1e-12
  %v181 = vadd.f32 %v152, 1e-12
  %v182 = vadd.f32 %v154, 1e-12
  %v183 = vadd.f32 %v156, 1e-12
  %v184 = vadd.f32 %v158, 1e-12
  %v185 = vadd.f32 %v160, 1e-12
  %v186 = vadd.f32 %v162, 1e-12
  %v187 = vadd.f32 %v164, 1e-12
  %v188 = vadd.f32 %v166, 1e-12
  %v189 = vadd.f32 %v168, 1e-12
  %v190 = vadd.f32 %v170, 1e-12
  %v191 = vadd.f32 %v172, 1e-12
  %v192 = vadd.f32 %v174, 1e-12
  %v193 = vrsqrt.pop %v175
  %v194 = vmul.f32 %v193, %v175
  %v195 = vmul.f32 %v194, %v193
  %v196 = vmul.f32 0.5, %v195
  %v197 = vsub.f32 1.5, %v196
  %v198 = vmul.f32 %v193, %v197
  %vm199 = vweird.f32 %v175
  %vm200 = vweird.f32 %v193
  %vm201 = vmor %vm199, %vm200
  %v202 = vsel %vm201, %v193, %v198
  %v203 = vrsqrt.pop %v176
  %v204 = vmul.f32 %v203, %v176
  %v205 = vmul.f32 %v204, %v203
  %v206 = vmul.f32 0.5, %v205
  %v207 = vsub.f32 1.5, %v206
  %v208 = vmul.f32 %v203, %v207
  %vm209 = vweird.f32 %v176
  %vm210 = vweird.f32 %v203
  %vm211 = vmor %vm209, %vm210
  %v212 = vsel %vm211, %v203, %v208
  %v213 = vrsqrt.pop %v177
  %v214 = vmul.f32 %v213, %v177
  %v215 = vmul.f32 %v214, %v213
  %v216 = vmul.f32 0.5, %v215
  %v217 = vsub.f32 1.5, %v216
  %v218 = vmul.f32 %v213, %v217
  %vm219 = vweird.f32 %v177
  %vm220 = vweird.f32 %v213
  %vm221 = vmor %vm219, %vm220
  %v222 = vsel %vm221, %v213, %v218
  %v223 = vrsqrt.pop %v178
  %v224 = vmul.f32 %v223, %v178
  %v225 = vmul.f32 %v224, %v223
  %v226 = vmul.f32 0.5, %v225
  %v227 = vsub.f32 1.5, %v226
  %v228 = vmul.f32 %v223, %v227
  %vm229 = vweird.f32 %v178
  %vm230 = vweird.f32 %v223
  %vm231 = vmor %vm229, %vm230
  %v232 = vsel %vm231, %v223, %v228
  %v233 = vrsqrt.pop %v179
  %v234 = vmul.f32 %v233, %v179
  %v235 = vmul.f32 %v234, %v233
  %v236 = vmul.f32 0.5, %v235
  %v237 = vsub.f32 1.5, %v236
  %v238 = vmul.f32 %v233, %v237
  %vm239 = vweird.f32 %v179
  %vm240 = vweird.f32 %v233
  %vm241 = vmor %vm239, %vm240
  %v242 = vsel %vm241, %v233, %v238
  %v243 = vrsqrt.pop %v180
  %v244 = vmul.f32 %v243, %v180
  %v245 = vmul.f32 %v244, %v243
  %v246 = vmul.f32 0.5, %v245
  %v247 = vsub.f32 1.5, %v246
  %v248 = vmul.f32 %v243, %v247
  %vm249 = vweird.f32 %v180
  %vm250 = vweird.f32 %v243
  %vm251 = vmor %vm249, %vm250
  %v252 = vsel %vm251, %v243, %v248
  %v253 = vrsqrt.pop %v181
  %v254 = vmul.f32 %v253, %v181
  %v255 = vmul.f32 %v254, %v253
  %v256 = vmul.f32 0.5, %v255
  %v257 = vsub.f32 1.5, %v256
  %v258 = vmul.f32 %v253, %v257
  %vm259 = vweird.f32 %v181
  %vm260 = vweird.f32 %v253
  %vm261 = vmor %vm259, %vm260
  %v262 = vsel %vm261, %v253, %v258
  %v263 = vrsqrt.pop %v182
  %v264 = vmul.f32 %v263, %v182
  %v265 = vmul.f32 %v264, %v263
  %v266 = vmul.f32 0.5, %v265
  %v267 = vsub.f32 1.5, %v266
  %v268 = vmul.f32 %v263, %v267
  %vm269 = vweird.f32 %v182
  %vm270 = vweird.f32 %v263
  %vm271 = vmor %vm269, %vm270
  %v272 = vsel %vm271, %v263, %v268
  %v273 = vrsqrt.pop %v183
  %v274 = vmul.f32 %v273, %v183
  %v275 = vmul.f32 %v274, %v273
  %v276 = vmul.f32 0.5, %v275
  %v277 = vsub.f32 1.5, %v276
  %v278 = vmul.f32 %v273, %v277
  %vm279 = vweird.f32 %v183
  %vm280 = vweird.f32 %v273
  %vm281 = vmor %vm279, %vm280
  %v282 = vsel %vm281, %v273, %v278
  %v283 = vrsqrt.pop %v184
  %v284 = vmul.f32 %v283, %v184
  %v285 = vmul.f32 %v284, %v283
  %v286 = vmul.f32 0.5, %v285
  %v287 = vsub.f32 1.5, %v286
  %v288 = vmul.f32 %v283, %v287
  %vm289 = vweird.f32 %v184
  %vm290 = vweird.f32 %v283
  %vm291 = vmor %vm289, %vm290
  %v292 = vsel %vm291, %v283, %v288
  %v293 = vrsqrt.pop %v185
  %v294 = vmul.f32 %v293, %v185
  %v295 = vmul.f32 %v294, %v293
  %v296 = vmul.f32 0.5, %v295
  %v297 = vsub.f32 1.5, %v296
  %v298 = vmul.f32 %v293, %v297
  %vm299 = vweird.f32 %v185
  %vm300 = vweird.f32 %v293
  %vm301 = vmor %vm299, %vm300
  %v302 = vsel %vm301, %v293, %v298
  %v303 = vrsqrt.pop %v186
  %v304 = vmul.f32 %v303, %v186
  %v305 = vmul.f32 %v304, %v303
  %v306 = vmul.f32 0.5, %v305
  %v307 = vsub.f32 1.5, %v306
  %v308 = vmul.f32 %v303, %v307
  %vm309 = vweird.f32 %v186
  %vm310 = vweird.f32 %v303
  %vm311 = vmor %vm309, %vm310
  %v312 = vsel %vm311, %v303, %v308
  %v313 = vrsqrt.pop %v187
  %v314 = vmul.f32 %v313, %v187
  %v315 = vmul.f32 %v314, %v313
  %v316 = vmul.f32 0.5, %v315
  %v317 = vsub.f32 1.5, %v316
  %v318 = vmul.f32 %v313, %v317
  %vm319 = vweird.f32 %v187
  %vm320 = vweird.f32 %v313
  %vm321 = vmor %vm319, %vm320
  %v322 = vsel %vm321, %v313, %v318
  %v323 = vrsqrt.pop %v188
  %v324 = vmul.f32 %v323, %v188
  %v325 = vmul.f32 %v324, %v323
  %v326 = vmul.f32 0.5, %v325
  %v327 = vsub.f32 1.5, %v326
  %v328 = vmul.f32 %v323, %v327
  %vm329 = vweird.f32 %v188
  %vm330 = vweird.f32 %v323
  %vm331 = vmor %vm329, %vm330
  %v332 = vsel %vm331, %v323, %v328
  %v333 = vrsqrt.pop %v189
  %v334 = vmul.f32 %v333, %v189
  %v335 = vmul.f32 %v334, %v333
  %v336 = vmul.f32 0.5, %v335
  %v337 = vsub.f32 1.5, %v336
  %v338 = vmul.f32 %v333, %v337
  %vm339 = vweird.f32 %v189
  %vm340 = vweird.f32 %v333
  %vm341 = vmor %vm339, %vm340
  %v342 = vsel %vm341, %v333, %v338
  %v343 = vrsqrt.pop %v190
  %v344 = vmul.f32 %v343, %v190
  %v345 = vmul.f32 %v344, %v343
  %v346 = vmul.f32 0.5, %v345
  %v347 = vsub.f32 1.5, %v346
  %v348 = vmul.f32 %v343, %v347
  %vm349 = vweird.f32 %v190
  %vm350 = vweird.f32 %v343
  %vm351 = vmor %vm349, %vm350
  %v352 = vsel %vm351, %v343, %v348
  %v353 = vrsqrt.pop %v191
  %v354 = vmul.f32 %v353, %v191
  %v355 = vmul.f32 %v354, %v353
  %v356 = vmul.f32 0.5, %v355
  %v357 = vsub.f32 1.5, %v356
  %v358 = vmul.f32 %v353, %v357
  %vm359 = vweird.f32 %v191
  %vm360 = vweird.f32 %v353
  %vm361 = vmor %vm359, %vm360
  %v362 = vsel %vm361, %v353, %v358
  %v363 = vrsqrt.pop %v192
  %v364 = vmul.f32 %v363, %v192
  %v365 = vmul.f32 %v364, %v363
  %v366 = vmul.f32 0.5, %v365
  %v367 = vsub.f32 1.5, %v366
  %v368 = vmul.f32 %v363, %v367
  %vm369 = vweird.f32 %v192
  %vm370 = vweird.f32 %v363
  %vm371 = vmor %vm369, %vm370
  %v372 = vsel %vm371, %v363, %v368
  %v373 = vmul.f32 %v68, %v202
  %v374 = vmul.f32 %v71, %v212
  %v375 = vmul.f32 %v74, %v222
  %v376 = vmul.f32 %v77, %v232
  %v377 = vmul.f32 %v80, %v242
  %v378 = vmul.f32 %v83, %v252
  %v379 = vmul.f32 %v86, %v262
  %v380 = vmul.f32 %v89, %v272
  %v381 = vmul.f32 %v92, %v282
  %v382 = vmul.f32 %v95, %v292
  %v383 = vmul.f32 %v98, %v302
  %v384 = vmul.f32 %v101, %v312
  %v385 = vmul.f32 %v104, %v322
  %v386 = vmul.f32 %v107, %v332
  %v387 = vmul.f32 %v110, %v342
  %v388 = vmul.f32 %v113, %v352
  %v389 = vmul.f32 %v116, %v362
  %v390 = vmul.f32 %v119, %v372
  %391 = vmatpush.xpose.msra.mxu0 %v390
  %392 = vmatpush.xpose.msra.mxu0 %v389
  %393 = vmatpush.xpose.msra.mxu0 %v388
  %394 = vmatpush.xpose.msra.mxu0 %v387
  %395 = vmatpush.xpose.msra.mxu0 %v386
  %396 = vmatpush.xpose.msra.mxu0 %v385
  %397 = vmatpush.xpose.msra.mxu0 %v384
  %398 = vmatpush.xpose.msra.mxu0 %v383
  %399 = vmatpush.xpose.msra.mxu0 %v382
  %400 = vmatpush.xpose.msra.mxu0 %v381
  %401 = vmatpush.xpose.msra.mxu0 %v380
  %402 = vmatpush.xpose.msra.mxu0 %v379
  %403 = vmatpush.xpose.msra.mxu0 %v378
  %404 = vmatpush.xpose.msra.mxu0 %v377
  %405 = vmatpush.xpose.msra.mxu0 %v376
  %406 = vmatpush.xpose.msra.mxu0 %v375
  %407 = vmatmul.f32.gmra.mxu0 %v373
  %v408 = vpop.f32.mrf.mxu0
  %v409 = vadd.f32 0.0, %v408
  %410 = vmatmul.f32.gmra.mxu0 %v374
  %v411 = vpop.f32.mrf.mxu0
  %v412 = vadd.f32 0.0, %v411
  %413 = vmatmul.f32.gmra.mxu0 %v375
  %v414 = vpop.f32.mrf.mxu0
  %v415 = vadd.f32 0.0, %v414
  %416 = vdwg.mxu0
  %v417 = vlaneseq
  %v418 = vshrl.u32 %v417, 7
  %v419 = vadd.s32 %v418, 8
  %v420 = vadd.s32 %v418, 16
  %vm421 = vcmp.ge.s32.totalorder %v418, 16
  %vm422 = vcmp.ge.s32.totalorder %v419, 16
  %vm423 = vcmp.ge.s32.totalorder %v420, 16
  %v424 = vstv %s15
  %v425 = vsel %vm421, %v424, 1.0
  %v426 = vsel %vm422, %v424, 1.0
  %v427 = vsel %vm423, %v424, 1.0
  %v428 = vmul.f32 %v409, %v425
  %v429 = vmul.f32 %v412, %v426
  %v430 = vmul.f32 %v415, %v427
  %431 = vst [vmem:[%s3] sm:$0xff] %v428
  %432 = vst [vmem:[%s3 + $0x8] sm:$0xff] %v429
  %433 = vst [vmem:[%s3 + $0x10] sm:$0xff] %v430
  // Predicated region
  $region14: #{medclip_forward.1} parent=0 // pred_check
    _
  $region15: #{medclip_forward.1} parent=0 // pred_check_branch
    %435 = sbr.rel (0) target = $region17
  $region16: #{medclip_forward.1} parent=0 // pred_region
    _
  $region17: #{medclip_forward.1} parent=0 // pred_fallthru
    _
  // Predicated region
  $region18: #{medclip_forward.1} parent=0 // pred_check
    _
  $region19: #{medclip_forward.1} parent=0 // pred_check_branch
    %437 = sbr.rel (0) target = $region21
  $region20: #{medclip_forward.1} parent=0 // pred_region
    _
  $region21: #{medclip_forward.1} parent=0 // pred_fallthru
    _

</llo_original>
